<compile_context>
chip_gen: v7x
topology: tpu7x:2x2x1
jax: 0.10.0
libtpu: 0.0.40
codegen_flags: <defaults>
</compile_context>

<pallas_src>
import jax
import jax.numpy as jnp
from jax.experimental import pallas as pl
from jax.experimental.pallas import tpu as pltpu

NEG_SLOPE = 0.01  # nn.LeakyReLU() default negative_slope
LANE = 128


def _round_up(n, m):
    return ((n + m - 1) // m) * m


def _leaky_relu(x):
    # Valid because NEG_SLOPE < 1: max(x, 0.01*x) == leaky_relu(x).
    # One vmul + one vmax on the VPU (no compare/select).
    return jnp.maximum(x, NEG_SLOPE * x)


def node_classifier_kernel(x_ref, w1_ref, b1_ref, w2_ref, b2_ref,
                           w3_ref, b3_ref, o_ref):
    cdt = w1_ref.dtype  # compute (MXU operand) dtype, typically bf16
    # mlp1 + LeakyReLU (f32 accumulation on MXU)
    h = jnp.dot(x_ref[...], w1_ref[...], preferred_element_type=jnp.float32)
    h = _leaky_relu(h + b1_ref[...])
    # mlp2 + LeakyReLU
    h = jnp.dot(h.astype(cdt), w2_ref[...], preferred_element_type=jnp.float32)
    h = _leaky_relu(h + b2_ref[...])
    # mlp3 (logits, no activation); lane-padded (128-wide) output slab
    out = jnp.dot(h.astype(cdt), w3_ref[...], preferred_element_type=jnp.float32)
    o_ref[...] = (out + b3_ref[...]).astype(o_ref.dtype)


def node_classifier(x, params, *, tile_m=1024, compute_dtype=jnp.bfloat16):
    """Fused forward pass of NodeClassifier.

    x: (B, latent_size) float32
    params: dict with w1 (L,H), b1 (1,H), w2 (H,H), b2 (1,H), w3 (H,3), b3 (1,3)
    returns: (B, 3) float32 logits
    """
    w1, b1 = params["w1"], params["b1"]
    w2, b2 = params["w2"], params["b2"]
    w3, b3 = params["w3"], params["b3"]

    B, L = x.shape
    H = w1.shape[1]
    C = w3.shape[1]  # 3 classes

    # Lane-dense output: pad the C=3 logits to a full 128-lane slab. The padded
    # weight/bias columns are zero, so they contribute nothing; the wrapper
    # slices back to C columns at the end.
    Cp = _round_up(max(C, LANE), LANE)
    w3p = jnp.zeros((H, Cp), w3.dtype).at[:, :C].set(w3)
    b3p = jnp.zeros((1, Cp), b3.dtype).at[:, :C].set(b3)

    # bf16 activations/weights (MXU-native, half the HBM traffic for x); biases
    # stay f32 and are added to the f32 accumulator.
    xc = x.astype(compute_dtype)
    w1c = w1.astype(compute_dtype)
    w2c = w2.astype(compute_dtype)
    w3c = w3p.astype(compute_dtype)
    b1f = b1.astype(jnp.float32)
    b2f = b2.astype(jnp.float32)
    b3f = b3p.astype(jnp.float32)

    # Effective tile: large enough to amortize per-step pipeline overhead, but
    # never larger than the (8-row aligned) batch so tiny batches still work.
    tm = min(tile_m, _round_up(B, 8))
    Bp = _round_up(B, tm)
    if Bp != B:
        xc = jnp.zeros((Bp, L), xc.dtype).at[:B].set(xc)

    grid = (Bp // tm,)

    # Advisory cost estimate for XLA scheduling around the custom call.
    flops = 2 * Bp * (L * H + H * H + H * Cp)
    bytes_accessed = int(
        Bp * L * xc.dtype.itemsize
        + sum(int(a.size) * a.dtype.itemsize
              for a in (w1c, b1f, w2c, b2f, w3c, b3f))
        + Bp * Cp * 4)

    out = pl.pallas_call(
        node_classifier_kernel,
        out_shape=jax.ShapeDtypeStruct((Bp, Cp), jnp.float32),
        grid_spec=pltpu.PrefetchScalarGridSpec(
            num_scalar_prefetch=0,
            grid=grid,
            in_specs=[
                pl.BlockSpec((tm, L), lambda i: (i, 0)),   # x tile (streamed)
                # Constant (0,0) index maps: weights/biases are DMA'd once and
                # stay VMEM-resident across all grid steps (~10 KB total).
                pl.BlockSpec((L, H), lambda i: (0, 0)),    # w1
                pl.BlockSpec((1, H), lambda i: (0, 0)),    # b1
                pl.BlockSpec((H, H), lambda i: (0, 0)),    # w2
                pl.BlockSpec((1, H), lambda i: (0, 0)),    # b2
                pl.BlockSpec((H, Cp), lambda i: (0, 0)),   # w3 (lane-padded)
                pl.BlockSpec((1, Cp), lambda i: (0, 0)),   # b3 (lane-padded)
            ],
            out_specs=pl.BlockSpec((tm, Cp), lambda i: (i, 0)),
        ),
        compiler_params=pltpu.CompilerParams(
            dimension_semantics=("parallel",)),
        cost_estimate=pl.CostEstimate(
            flops=int(flops), transcendentals=0, bytes_accessed=bytes_accessed),
    )(xc, w1c, b1f, w2c, b2f, w3c, b3f)

    return out[:B, :C]


def init_params(key, latent_size, hidden_size):
    """Deterministic init mimicking PyTorch Linear (uniform +/- 1/sqrt(fan_in)),
    stored as (in_features, out_features)."""
    ks = jax.random.split(key, 6)

    def linear(kw, kb, fan_in, fan_out):
        bound = 1.0 / jnp.sqrt(jnp.float32(fan_in))
        w = jax.random.uniform(kw, (fan_in, fan_out), jnp.float32, -bound, bound)
        b = jax.random.uniform(kb, (1, fan_out), jnp.float32, -bound, bound)
        return w, b

    w1, b1 = linear(ks[0], ks[1], latent_size, hidden_size)
    w2, b2 = linear(ks[2], ks[3], hidden_size, hidden_size)
    w3, b3 = linear(ks[4], ks[5], hidden_size, 3)
    return {"w1": w1, "b1": b1, "w2": w2, "b2": b2, "w3": w3, "b3": b3}


def node_classifier_ref(x, p, compute_dtype=jnp.bfloat16):
    """Pure-JAX reference mirroring the kernel's mixed-precision casts."""
    cdt = compute_dtype
    h = jnp.dot(x.astype(cdt), p["w1"].astype(cdt),
                preferred_element_type=jnp.float32) + p["b1"].astype(jnp.float32)
    h = _leaky_relu(h)
    h = jnp.dot(h.astype(cdt), p["w2"].astype(cdt),
                preferred_element_type=jnp.float32) + p["b2"].astype(jnp.float32)
    h = _leaky_relu(h)
    return jnp.dot(h.astype(cdt), p["w3"].astype(cdt),
                   preferred_element_type=jnp.float32) + p["b3"].astype(jnp.float32)


if __name__ == "__main__":
    latent_size = 32
    hidden_size = 32
    batch = 8

    key = jax.random.PRNGKey(0)
    k_x, k_p = jax.random.split(key)
    x = jax.random.normal(k_x, (batch, latent_size), jnp.float32)
    params = init_params(k_p, latent_size, hidden_size)

    # End-to-end jitted call: padding/casting in the wrapper fuse into the same
    # compiled program as the pallas_call.
    run = jax.jit(lambda xx: node_classifier(xx, params))
    out = jax.block_until_ready(run(x))
    assert out.shape == (batch, 3)
    assert out.dtype == jnp.float32

    ref = node_classifier_ref(x, params)
    assert jnp.allclose(out, ref, atol=1e-3, rtol=1e-3), "mismatch vs reference"

    # Extra check: ragged batch (exercises zero-padding + multi-step grid).
    x2 = jax.random.normal(jax.random.PRNGKey(1), (200, latent_size), jnp.float32)
    out2 = jax.block_until_ready(node_classifier(x2, params, tile_m=128))
    ref2 = node_classifier_ref(x2, params)
    assert out2.shape == (200, 3)
    assert jnp.allclose(out2, ref2, atol=1e-3, rtol=1e-3), "mismatch (ragged batch)"

    print("KERNEL_OK")
</pallas_src>

<mosaic_0001>
module attributes {stable_mosaic.version = 11 : i64} {
  func.func @node_classifier_kernel(%arg0: i32, %arg1: memref<8x32xbf16, #tpu.memory_space<vmem>>, %arg2: memref<32x32xbf16, #tpu.memory_space<vmem>>, %arg3: memref<1x32xf32, #tpu.memory_space<vmem>>, %arg4: memref<32x32xbf16, #tpu.memory_space<vmem>>, %arg5: memref<1x32xf32, #tpu.memory_space<vmem>>, %arg6: memref<32x128xbf16, #tpu.memory_space<vmem>>, %arg7: memref<1x128xf32, #tpu.memory_space<vmem>>, %arg8: memref<8x128xf32, #tpu.memory_space<vmem>>) attributes {dimension_semantics = [#tpu.dimension_semantics<parallel>], iteration_bounds = array<i64: 1>, scalar_prefetch = 0 : i64, scratch_operands = 0 : i64, tpu.core_type = #tpu.core_type<tc>, window_params = [{transform_indices = @transform_0, window_bounds = array<i64: 8, 32>}, {pipeline_mode = #tpu.pipeline_mode<synchronous>, transform_indices = @transform_1, window_bounds = array<i64: 32, 32>}, {pipeline_mode = #tpu.pipeline_mode<synchronous>, transform_indices = @transform_2, window_bounds = array<i64: 1, 32>}, {pipeline_mode = #tpu.pipeline_mode<synchronous>, transform_indices = @transform_3, window_bounds = array<i64: 32, 32>}, {pipeline_mode = #tpu.pipeline_mode<synchronous>, transform_indices = @transform_4, window_bounds = array<i64: 1, 32>}, {pipeline_mode = #tpu.pipeline_mode<synchronous>, transform_indices = @transform_5, window_bounds = array<i64: 32, 128>}, {pipeline_mode = #tpu.pipeline_mode<synchronous>, transform_indices = @transform_6, window_bounds = array<i64: 1, 128>}, {transform_indices = @transform_7, window_bounds = array<i64: 8, 128>}]} {
    %c0 = arith.constant 0 : index
    %c0_0 = arith.constant 0 : index
    %0 = vector.load %arg1[%c0, %c0_0] : memref<8x32xbf16, #tpu.memory_space<vmem>>, vector<8x32xbf16>
    %c0_1 = arith.constant 0 : index
    %c0_2 = arith.constant 0 : index
    %1 = vector.load %arg2[%c0_1, %c0_2] : memref<32x32xbf16, #tpu.memory_space<vmem>>, vector<32x32xbf16>
    %cst = arith.constant dense<0.000000e+00> : vector<8x32xf32>
    %2 = tpu.matmul %0, %1, %cst {dimension_numbers = #tpu.dot_dimension_numbers<[1], [0], [0], [1], [0, 0, 1, 1], [], []>} : vector<8x32xbf16>, vector<32x32xbf16>, vector<8x32xf32> -> vector<8x32xf32>
    %c0_3 = arith.constant 0 : index
    %c0_4 = arith.constant 0 : index
    %3 = vector.load %arg3[%c0_3, %c0_4] : memref<1x32xf32, #tpu.memory_space<vmem>>, vector<1x32xf32>
    %4 = vector.broadcast %3 : vector<1x32xf32> to vector<8x32xf32>
    %5 = arith.addf %2, %4 : vector<8x32xf32>
    %cst_5 = arith.constant 0.00999999977 : f32
    %6 = vector.broadcast %cst_5 : f32 to vector<8x32xf32>
    %7 = arith.mulf %6, %5 : vector<8x32xf32>
    %8 = arith.maximumf %5, %7 : vector<8x32xf32>
    %9 = arith.truncf %8 : vector<8x32xf32> to vector<8x32xbf16>
    %c0_6 = arith.constant 0 : index
    %c0_7 = arith.constant 0 : index
    %10 = vector.load %arg4[%c0_6, %c0_7] : memref<32x32xbf16, #tpu.memory_space<vmem>>, vector<32x32xbf16>
    %cst_8 = arith.constant dense<0.000000e+00> : vector<8x32xf32>
    %11 = tpu.matmul %9, %10, %cst_8 {dimension_numbers = #tpu.dot_dimension_numbers<[1], [0], [0], [1], [0, 0, 1, 1], [], []>} : vector<8x32xbf16>, vector<32x32xbf16>, vector<8x32xf32> -> vector<8x32xf32>
    %c0_9 = arith.constant 0 : index
    %c0_10 = arith.constant 0 : index
    %12 = vector.load %arg5[%c0_9, %c0_10] : memref<1x32xf32, #tpu.memory_space<vmem>>, vector<1x32xf32>
    %13 = vector.broadcast %12 : vector<1x32xf32> to vector<8x32xf32>
    %14 = arith.addf %11, %13 : vector<8x32xf32>
    %cst_11 = arith.constant 0.00999999977 : f32
    %15 = vector.broadcast %cst_11 : f32 to vector<8x32xf32>
    %16 = arith.mulf %15, %14 : vector<8x32xf32>
    %17 = arith.maximumf %14, %16 : vector<8x32xf32>
    %18 = arith.truncf %17 : vector<8x32xf32> to vector<8x32xbf16>
    %c0_12 = arith.constant 0 : index
    %c0_13 = arith.constant 0 : index
    %19 = vector.load %arg6[%c0_12, %c0_13] : memref<32x128xbf16, #tpu.memory_space<vmem>>, vector<32x128xbf16>
    %cst_14 = arith.constant dense<0.000000e+00> : vector<8x128xf32>
    %20 = tpu.matmul %18, %19, %cst_14 {dimension_numbers = #tpu.dot_dimension_numbers<[1], [0], [0], [1], [0, 0, 1, 1], [], []>} : vector<8x32xbf16>, vector<32x128xbf16>, vector<8x128xf32> -> vector<8x128xf32>
    %c0_15 = arith.constant 0 : index
    %c0_16 = arith.constant 0 : index
    %21 = vector.load %arg7[%c0_15, %c0_16] : memref<1x128xf32, #tpu.memory_space<vmem>>, vector<1x128xf32>
    %22 = vector.broadcast %21 : vector<1x128xf32> to vector<8x128xf32>
    %23 = arith.addf %20, %22 : vector<8x128xf32>
    %c0_17 = arith.constant 0 : index
    %c0_18 = arith.constant 0 : index
    %24 = vector.load %arg8[%c0_17, %c0_18] : memref<8x128xf32, #tpu.memory_space<vmem>>, vector<8x128xf32>
    tpu.vector_store %arg8[%c0_17, %c0_18], %23 {strides = array<i32>} : memref<8x128xf32, #tpu.memory_space<vmem>>, vector<8x128xf32>,
    return
  }
  func.func @transform_0(%arg0: i32) -> (i32, i32) {
    %c0_i32 = arith.constant 0 : i32
    %c0_i32_0 = arith.constant 0 : i32
    return %arg0, %c0_i32 : i32, i32
  }
  func.func @transform_1(%arg0: i32) -> (i32, i32) {
    %c0_i32 = arith.constant 0 : i32
    %c0_i32_0 = arith.constant 0 : i32
    %c0_i32_1 = arith.constant 0 : i32
    return %c0_i32, %c0_i32_0 : i32, i32
  }
  func.func @transform_2(%arg0: i32) -> (i32, i32) {
    %c0_i32 = arith.constant 0 : i32
    %c0_i32_0 = arith.constant 0 : i32
    %c0_i32_1 = arith.constant 0 : i32
    return %c0_i32, %c0_i32_0 : i32, i32
  }
  func.func @transform_3(%arg0: i32) -> (i32, i32) {
    %c0_i32 = arith.constant 0 : i32
    %c0_i32_0 = arith.constant 0 : i32
    %c0_i32_1 = arith.constant 0 : i32
    return %c0_i32, %c0_i32_0 : i32, i32
  }
  func.func @transform_4(%arg0: i32) -> (i32, i32) {
    %c0_i32 = arith.constant 0 : i32
    %c0_i32_0 = arith.constant 0 : i32
    %c0_i32_1 = arith.constant 0 : i32
    return %c0_i32, %c0_i32_0 : i32, i32
  }
  func.func @transform_5(%arg0: i32) -> (i32, i32) {
    %c0_i32 = arith.constant 0 : i32
    %c0_i32_0 = arith.constant 0 : i32
    %c0_i32_1 = arith.constant 0 : i32
    return %c0_i32, %c0_i32_0 : i32, i32
  }
  func.func @transform_6(%arg0: i32) -> (i32, i32) {
    %c0_i32 = arith.constant 0 : i32
    %c0_i32_0 = arith.constant 0 : i32
    %c0_i32_1 = arith.constant 0 : i32
    return %c0_i32, %c0_i32_0 : i32, i32
  }
  func.func @transform_7(%arg0: i32) -> (i32, i32) {
    %c0_i32 = arith.constant 0 : i32
    %c0_i32_0 = arith.constant 0 : i32
    return %arg0, %c0_i32 : i32, i32
  }
}

</mosaic_0001>

<llo_original>
// kernel: _lambda_.1
$region0: #{_lambda_.1}
  #allocation0 [shape = 'u32[]', space=smem, size = 0x4, offset = 0x4, fixed_abs, tag = 'smem constant byte address 0x4 - core index']
  #allocation1 [shape = 'u32[144,128]{1,0:T(1,128)}', space=vmem, size = 0x12000, scoped, tag = 'internal scratch']
  %s0 = inlined_call_operand.vmem [shape: bf16[8,32], index: 0, kind: input, shape index: {}]
  %s1 = inlined_call_operand.vmem [shape: bf16[32,32], index: 1, kind: input, shape index: {}]
  %s2 = inlined_call_operand.vmem [shape: f32[1,32], index: 2, kind: input, shape index: {}]
  %s3 = inlined_call_operand.vmem [shape: bf16[32,32], index: 3, kind: input, shape index: {}]
  %s4 = inlined_call_operand.vmem [shape: f32[1,32], index: 4, kind: input, shape index: {}]
  %s5 = inlined_call_operand.vmem [shape: bf16[32,128], index: 5, kind: input, shape index: {}]
  %s6 = inlined_call_operand.vmem [shape: f32[1,128], index: 6, kind: input, shape index: {}]
  %s7 = inlined_call_operand.vmem [shape: f32[8,128], index: 7, kind: output, shape index: {}]
  %s8 = sld [smem:[#allocation0]]
  $region38: #{_lambda_.1} parent=0
    _
  %s10 = ssub.s32 1, %s8
  %s11 = scalar_select 0, %s10, %s8
  // Predicated region
  $region2: #{_lambda_.1} parent=0 // pred_check
    _
  $region3: #{_lambda_.1} parent=0 // pred_check_branch
    %13 = sbr.rel (0) target = $region5
  $region4: #{_lambda_.1} parent=0 // pred_region
    _
  $region5: #{_lambda_.1} parent=0 // pred_fallthru
    _
  // Predicated region
  $region6: #{_lambda_.1} parent=0 // pred_check
    _
  $region7: #{_lambda_.1} parent=0 // pred_check_branch
    %15 = sbr.rel (0) target = $region9
  $region8: #{_lambda_.1} parent=0 // pred_region
    _
  $region9: #{_lambda_.1} parent=0 // pred_fallthru
    _
  // Predicated region
  $region10: #{_lambda_.1} parent=0 // pred_check
    _
  $region11: #{_lambda_.1} parent=0 // pred_check_branch
    %17 = sbr.rel (0) target = $region13
  $region12: #{_lambda_.1} parent=0 // pred_region
    _
  $region13: #{_lambda_.1} parent=0 // pred_fallthru
    _
  // Predicated region
  $region14: #{_lambda_.1} parent=0 // pred_check
    _
  $region15: #{_lambda_.1} parent=0 // pred_check_branch
    %19 = sbr.rel (0) target = $region17
  $region16: #{_lambda_.1} parent=0 // pred_region
    _
  $region17: #{_lambda_.1} parent=0 // pred_fallthru
    _
  // Predicated region
  $region18: #{_lambda_.1} parent=0 // pred_check
    _
  $region19: #{_lambda_.1} parent=0 // pred_check_branch
    %21 = sbr.rel (0) target = $region21
  $region20: #{_lambda_.1} parent=0 // pred_region
    _
  $region21: #{_lambda_.1} parent=0 // pred_fallthru
    _
  // Predicated region
  $region22: #{_lambda_.1} parent=0 // pred_check
    _
  $region23: #{_lambda_.1} parent=0 // pred_check_branch
    %23 = sbr.rel (0) target = $region25
  $region24: #{_lambda_.1} parent=0 // pred_region
    _
  $region25: #{_lambda_.1} parent=0 // pred_fallthru
    _
  // Predicated region
  $region26: #{_lambda_.1} parent=0 // pred_check
    _
  $region27: #{_lambda_.1} parent=0 // pred_check_branch
    %25 = sbr.rel (0) target = $region29
  $region28: #{_lambda_.1} parent=0 // pred_region
    _
  $region29: #{_lambda_.1} parent=0 // pred_fallthru
    _
  %v27 = vld [vmem:[%s0] sm:$0xf]
  %v28 = vld [vmem:[%s1] sm:$0xf]
  %v29 = vld [vmem:[%s1 + $0x4] sm:$0xf]
  %v30 = vld [vmem:[%s1 + $0x8] sm:$0xf]
  %v31 = vld [vmem:[%s1 + $0xc] sm:$0xf]
  %v32 = vld [vmem:[%s2] sm:$0x1]
  %v34 = vlaneseq
  %v35 = vshrl.u32 %v34, 7
  %v36 = vsub.s32 0, %v35
  %v37 = vrot.slane %v32, %v36
  %v43 = vunpack.c.l.b16 %v28
  %v44 = vunpack.c.l.b16 %v29
  %v45 = vunpack.c.l.b16 %v30
  %v46 = vunpack.c.l.b16 %v31
  %v47 = vpack.c.b16 %v44, %v43
  %v48 = vpack.c.b16 %v46, %v45
  %vm51 = vcmask 261120
  %v53 = vsel %vm51, %v27, 0
  %55 = vmatprep.subr.bf16.mxu0 0
  %56 = vmatpush1.bf16.msra.mxu0 %v47
  %57 = vmatprep.subr.bf16.mxu0 0
  %58 = vmatpush1.bf16.msra.mxu0 %v48
  %59 = vmatprep.subr.bf16.mxu0 0
  %60 = vmatpush1.bf16.msra.mxu0 0
  %61 = vmatprep.subr.bf16.mxu0 0
  %62 = vmatpush1.bf16.msra.mxu0 0
  %63 = vmatprep.subr.bf16.mxu0 0
  %64 = vmatpush1.bf16.msra.mxu0 0
  %65 = vmatprep.subr.bf16.mxu0 0
  %66 = vmatpush1.bf16.msra.mxu0 0
  %67 = vmatprep.subr.bf16.mxu0 0
  %68 = vmatpush1.bf16.msra.mxu0 0
  %69 = vmatprep.subr.bf16.mxu0 0
  %70 = vmatpush1.bf16.msra.mxu0 0
  %71 = vmatprep.subr.bf16.mxu0 0
  %72 = vmatpush1.bf16.msra.mxu0 0
  %73 = vmatprep.subr.bf16.mxu0 0
  %74 = vmatpush1.bf16.msra.mxu0 0
  %75 = vmatprep.subr.bf16.mxu0 0
  %76 = vmatpush1.bf16.msra.mxu0 0
  %77 = vmatprep.subr.bf16.mxu0 0
  %78 = vmatpush1.bf16.msra.mxu0 0
  %79 = vmatprep.subr.bf16.mxu0 0
  %80 = vmatpush1.bf16.msra.mxu0 0
  %81 = vmatprep.subr.bf16.mxu0 0
  %82 = vmatpush1.bf16.msra.mxu0 0
  %83 = vmatprep.subr.bf16.mxu0 0
  %84 = vmatpush1.bf16.msra.mxu0 0
  %85 = vmatprep.subr.bf16.mxu0 0
  %86 = vmatpush1.bf16.msra.mxu0 0
  %87 = vmatprep.mubr.bf16.mxu0 0
  %88 = vmatmul.mubr.bf16.gmra.mrb[0].mxu0 %v53
  %v89 = vpop.f32.mrb[0].mxu0
  %v90 = vadd.f32 %v37, %v89
  %v91 = vpop.f32.mrb[0].mxu0
  %v92 = vpop.f32.mrb[0].mxu0
  %v93 = vpop.f32.mrb[0].mxu0
  %94 = vdwg.mxu0
  %v95 = vmul.f32 %v90, 0.01
  %v96 = vmax.f32 %v90, %v95
  %v97 = vpack.c.bf16 %v96, %v96
  %v98 = vld [vmem:[%s3] sm:$0xf]
  %v99 = vld [vmem:[%s3 + $0x4] sm:$0xf]
  %v100 = vld [vmem:[%s3 + $0x8] sm:$0xf]
  %v101 = vld [vmem:[%s3 + $0xc] sm:$0xf]
  %v102 = vld [vmem:[%s4] sm:$0x1]
  %v104 = vlaneseq
  %v105 = vshrl.u32 %v104, 7
  %v106 = vsub.s32 0, %v105
  %v107 = vrot.slane %v102, %v106
  %v113 = vunpack.c.l.b16 %v98
  %v114 = vunpack.c.l.b16 %v99
  %v115 = vunpack.c.l.b16 %v100
  %v116 = vunpack.c.l.b16 %v101
  %v117 = vpack.c.b16 %v114, %v113
  %v118 = vpack.c.b16 %v116, %v115
  %v122 = vsel %vm51, %v97, 0
  %124 = vmatprep.subr.bf16.mxu0 0
  %125 = vmatpush1.bf16.msra.mxu0 %v117
  %126 = vmatprep.subr.bf16.mxu0 0
  %127 = vmatpush1.bf16.msra.mxu0 %v118
  %128 = vmatprep.subr.bf16.mxu0 0
  %129 = vmatpush1.bf16.msra.mxu0 0
  %130 = vmatprep.subr.bf16.mxu0 0
  %131 = vmatpush1.bf16.msra.mxu0 0
  %132 = vmatprep.subr.bf16.mxu0 0
  %133 = vmatpush1.bf16.msra.mxu0 0
  %134 = vmatprep.subr.bf16.mxu0 0
  %135 = vmatpush1.bf16.msra.mxu0 0
  %136 = vmatprep.subr.bf16.mxu0 0
  %137 = vmatpush1.bf16.msra.mxu0 0
  %138 = vmatprep.subr.bf16.mxu0 0
  %139 = vmatpush1.bf16.msra.mxu0 0
  %140 = vmatprep.subr.bf16.mxu0 0
  %141 = vmatpush1.bf16.msra.mxu0 0
  %142 = vmatprep.subr.bf16.mxu0 0
  %143 = vmatpush1.bf16.msra.mxu0 0
  %144 = vmatprep.subr.bf16.mxu0 0
  %145 = vmatpush1.bf16.msra.mxu0 0
  %146 = vmatprep.subr.bf16.mxu0 0
  %147 = vmatpush1.bf16.msra.mxu0 0
  %148 = vmatprep.subr.bf16.mxu0 0
  %149 = vmatpush1.bf16.msra.mxu0 0
  %150 = vmatprep.subr.bf16.mxu0 0
  %151 = vmatpush1.bf16.msra.mxu0 0
  %152 = vmatprep.subr.bf16.mxu0 0
  %153 = vmatpush1.bf16.msra.mxu0 0
  %154 = vmatprep.subr.bf16.mxu0 0
  %155 = vmatpush1.bf16.msra.mxu0 0
  %156 = vmatprep.mubr.bf16.mxu0 0
  %157 = vmatmul.mubr.bf16.gmra.mrb[0].mxu0 %v122
  %v158 = vpop.f32.mrb[0].mxu0
  %v159 = vadd.f32 %v107, %v158
  %v160 = vpop.f32.mrb[0].mxu0
  %v161 = vpop.f32.mrb[0].mxu0
  %v162 = vpop.f32.mrb[0].mxu0
  %163 = vdwg.mxu0
  %v164 = vmul.f32 %v159, 0.01
  %v165 = vmax.f32 %v159, %v164
  %v166 = vpack.c.bf16 %v165, %v165
  %v167 = vld [vmem:[%s5] sm:$0xf]
  %v168 = vld [vmem:[%s5 + $0x4] sm:$0xf]
  %v169 = vld [vmem:[%s5 + $0x8] sm:$0xf]
  %v170 = vld [vmem:[%s5 + $0xc] sm:$0xf]
  %v171 = vld [vmem:[%s6] sm:$0x1]
  %v173 = vlaneseq
  %v174 = vshrl.u32 %v173, 7
  %v175 = vsub.s32 0, %v174
  %v176 = vrot.slane %v171, %v175
  %v182 = vunpack.c.l.b16 %v167
  %v183 = vunpack.c.l.b16 %v168
  %v184 = vunpack.c.l.b16 %v169
  %v185 = vunpack.c.l.b16 %v170
  %v186 = vpack.c.b16 %v183, %v182
  %v187 = vpack.c.b16 %v185, %v184
  %v191 = vsel %vm51, %v166, 0
  %193 = vmatprep.subr.bf16.mxu0 0
  %194 = vmatpush1.bf16.msra.mxu0 %v186
  %195 = vmatprep.subr.bf16.mxu0 0
  %196 = vmatpush1.bf16.msra.mxu0 %v187
  %197 = vmatprep.subr.bf16.mxu0 0
  %198 = vmatpush1.bf16.msra.mxu0 0
  %199 = vmatprep.subr.bf16.mxu0 0
  %200 = vmatpush1.bf16.msra.mxu0 0
  %201 = vmatprep.subr.bf16.mxu0 0
  %202 = vmatpush1.bf16.msra.mxu0 0
  %203 = vmatprep.subr.bf16.mxu0 0
  %204 = vmatpush1.bf16.msra.mxu0 0
  %205 = vmatprep.subr.bf16.mxu0 0
  %206 = vmatpush1.bf16.msra.mxu0 0
  %207 = vmatprep.subr.bf16.mxu0 0
  %208 = vmatpush1.bf16.msra.mxu0 0
  %209 = vmatprep.subr.bf16.mxu0 0
  %210 = vmatpush1.bf16.msra.mxu0 0
  %211 = vmatprep.subr.bf16.mxu0 0
  %212 = vmatpush1.bf16.msra.mxu0 0
  %213 = vmatprep.subr.bf16.mxu0 0
  %214 = vmatpush1.bf16.msra.mxu0 0
  %215 = vmatprep.subr.bf16.mxu0 0
  %216 = vmatpush1.bf16.msra.mxu0 0
  %217 = vmatprep.subr.bf16.mxu0 0
  %218 = vmatpush1.bf16.msra.mxu0 0
  %219 = vmatprep.subr.bf16.mxu0 0
  %220 = vmatpush1.bf16.msra.mxu0 0
  %221 = vmatprep.subr.bf16.mxu0 0
  %222 = vmatpush1.bf16.msra.mxu0 0
  %223 = vmatprep.subr.bf16.mxu0 0
  %224 = vmatpush1.bf16.msra.mxu0 0
  %225 = vmatprep.mubr.bf16.mxu0 0
  %226 = vmatmul.mubr.bf16.gmra.mrb[0].mxu0 %v191
  %v227 = vpop.f32.mrb[0].mxu0
  %v228 = vadd.f32 %v176, %v227
  %v229 = vpop.f32.mrb[0].mxu0
  %v230 = vpop.f32.mrb[0].mxu0
  %v231 = vpop.f32.mrb[0].mxu0
  %232 = vdwg.mxu0
  %233 = vst [vmem:[%s7] sm:$0xff] %v228
  // Predicated region
  $region30: #{_lambda_.1} parent=0 // pred_check
    _
  $region31: #{_lambda_.1} parent=0 // pred_check_branch
    %235 = sbr.rel (0) target = $region33
  $region32: #{_lambda_.1} parent=0 // pred_region
    _
  $region33: #{_lambda_.1} parent=0 // pred_fallthru
    _
  // Predicated region
  $region34: #{_lambda_.1} parent=0 // pred_check
    _
  $region35: #{_lambda_.1} parent=0 // pred_check_branch
    %237 = sbr.rel (0) target = $region37
  $region36: #{_lambda_.1} parent=0 // pred_region
    _
  $region37: #{_lambda_.1} parent=0 // pred_fallthru
    _

</llo_original>
